<compile_context>
chip_gen: v6e
topology: v6e:2x2x1
jax: 0.10.0
libtpu: 0.0.40
codegen_flags: <defaults>
</compile_context>

<pallas_src>
import numpy as np
import jax
import jax.numpy as jnp
from jax.experimental import pallas as pl
from jax.experimental.pallas import tpu as pltpu

_GAP = 8  # zero rows between images in the staging buffer (8 = sublane tile)


def basic_block_kernel(x_ref, wm1_ref, b1_ref, wm2_ref, b2_ref, out_ref, st_ref):
    # x_ref:   (B, H, W*C)          unpadded input rows, f32
    # wm*_ref: (W*C, 3*W*C)         packed conv weights (BN scale folded), cdt
    # b*_ref:  (1, W*C)             folded BN bias, lane-dense, f32
    # out_ref: (B, H, W*C)
    # st_ref:  (GAP + B*(H+GAP), W*C) staging scratch, cdt.  Layout per image b:
    #          data rows at [GAP + b*(H+GAP), ... + H); 8 zero rows between
    #          blocks serve as the 3x3 top/bottom padding and keep every data
    #          block 8-sublane aligned.
    B, H, WC = out_ref.shape
    stride = H + _GAP
    cdt = wm1_ref.dtype  # compute dtype for the MXU (bf16 default, f32 optional)

    # Re-zero the B+1 gap blocks every step (tiny aligned stores; megacore-safe,
    # data rows are fully overwritten below so nothing else needs zeroing).
    zero_gap = jnp.zeros((_GAP, WC), st_ref.dtype)
    for g in range(B + 1):
        st_ref[g * stride:g * stride + _GAP, :] = zero_gap

    # Stage the B images into the gapped, aligned layout (cast to compute dtype).
    for b in range(B):
        d = _GAP + b * stride
        st_ref[d:d + H, :] = x_ref[b].astype(cdt)

    def conv_taps(y, d):
        # Combine the three ky taps for the image whose data rows start at d:
        # out[h] = Y_ky0[d-1+h] + Y_ky1[d+h] + Y_ky2[d+1+h]; the zero gap rows
        # supply the H-padding implicitly.
        return (y[d - 1:d - 1 + H, 0:WC]
                + y[d:d + H, WC:2 * WC]
                + y[d + 1:d + 1 + H, 2 * WC:3 * WC])

    # conv1 -> bn1 (scale folded into wm1, bias here) -> relu.
    # ONE MXU matmul over all B images: M = GAP + B*(H+GAP), K = W*C, N = 3*W*C.
    y1 = jnp.dot(st_ref[...], wm1_ref[...], preferred_element_type=jnp.float32)
    for b in range(B):
        d = _GAP + b * stride
        h1 = jnp.maximum(conv_taps(y1, d) + b1_ref[...], 0.0)
        # Reuse the staging buffer for the hidden activation (gap rows stay 0).
        st_ref[d:d + H, :] = h1.astype(cdt)

    # conv2 -> bn2 -> + identity -> relu.
    y2 = jnp.dot(st_ref[...], wm2_ref[...], preferred_element_type=jnp.float32)
    for b in range(B):
        d = _GAP + b * stride
        res = conv_taps(y2, d) + b2_ref[...] + x_ref[b].astype(jnp.float32)
        out_ref[b] = jnp.maximum(res, 0.0).astype(out_ref.dtype)


def basic_block_pallas(x_nchw, w1, bn1, w2, bn2, eps=1e-5,
                       compute_dtype=jnp.bfloat16, block_n=2):
    """x_nchw: (N,C,H,W); w*: (Cout,Cin,3,3); bn*: (gamma, beta, mean, var)."""
    N, C, H, W = x_nchw.shape
    assert w1.shape == (C, C, 3, 3) and w2.shape == (C, C, 3, 3), \
        "identity-shortcut BasicBlock requires inplanes == planes"
    assert N % block_n == 0, "batch must be divisible by block_n"
    assert H % 8 == 0, "H must be a multiple of 8 for the aligned staging layout"
    WC = W * C
    m_rows = _GAP + block_n * (H + _GAP)

    # NCHW -> lane-dense rows (N, H, W*C).  No wrapper-side padding; the 3x3
    # H-padding lives inside the kernel's staging buffer.  (Keep activations in
    # this rows layout between blocks when chaining layers.)
    x_rows = jnp.transpose(x_nchw, (0, 2, 3, 1)).reshape(N, H, WC)

    def fold_bn(bn):
        gamma, beta, mean, var = bn
        scale = gamma / jnp.sqrt(var + eps)
        bias = beta - mean * scale
        return scale, bias

    s1, b1 = fold_bn(bn1)
    s2, b2 = fold_bn(bn2)

    # Selector S[dx, w_in, w_out] = 1 iff w_in == w_out + dx - 1 (encodes the
    # kx taps AND the zero padding along W inside the weight matrix).
    S = np.zeros((3, W, W), np.float32)
    for dx in range(3):
        for wo in range(W):
            wi = wo + dx - 1
            if 0 <= wi < W:
                S[dx, wi, wo] = 1.0
    S = jnp.asarray(S)

    def build_wmat(w, scale):
        # w: (Cout, Cin, 3, 3) -> WM: (W*Cin, 3*W*Cout), BN scale folded in.
        wt = jnp.transpose(w, (2, 3, 1, 0))            # (ky, kx, Cin, Cout)
        wm = jnp.einsum('xio,yxcd->icyod', S, wt)      # (w_in, Cin, ky, w_out, Cout)
        wm = wm * scale[None, None, None, None, :]
        return wm.reshape(W * C, 3 * W * C).astype(compute_dtype)

    wm1 = build_wmat(w1, s1)
    wm2 = build_wmat(w2, s2)
    b1_d = jnp.tile(b1, W).reshape(1, WC).astype(jnp.float32)
    b2_d = jnp.tile(b2, W).reshape(1, WC).astype(jnp.float32)

    out_rows = pl.pallas_call(
        basic_block_kernel,
        out_shape=jax.ShapeDtypeStruct((N, H, WC), x_nchw.dtype),
        grid=(N // block_n,),
        in_specs=[
            pl.BlockSpec((block_n, H, WC), lambda n: (n, 0, 0)),
            pl.BlockSpec((WC, 3 * WC), lambda n: (0, 0)),
            pl.BlockSpec((1, WC), lambda n: (0, 0)),
            pl.BlockSpec((WC, 3 * WC), lambda n: (0, 0)),
            pl.BlockSpec((1, WC), lambda n: (0, 0)),
        ],
        out_specs=pl.BlockSpec((block_n, H, WC), lambda n: (n, 0, 0)),
        scratch_shapes=[pltpu.VMEM((m_rows, WC), compute_dtype)],
        compiler_params=pltpu.CompilerParams(
            dimension_semantics=("parallel",)),
    )(x_rows, wm1, b1_d, wm2, b2_d)

    # (N, H, W*C) -> NCHW
    return jnp.transpose(out_rows.reshape(N, H, W, C), (0, 3, 1, 2))


def basic_block_ref(x_nchw, w1, bn1, w2, bn2, eps=1e-5):
    """Pure-JAX reference matching PyTorch BasicBlock.forward (eval-mode BN)."""
    def conv(x, w):
        return jax.lax.conv_general_dilated(
            x, w, window_strides=(1, 1), padding=((1, 1), (1, 1)),
            dimension_numbers=('NCHW', 'OIHW', 'NCHW'),
            precision=jax.lax.Precision.HIGHEST)

    def bn(x, p):
        g, b, m, v = (a[None, :, None, None] for a in p)
        return (x - m) / jnp.sqrt(v + eps) * g + b

    out = jax.nn.relu(bn(conv(x_nchw, w1), bn1))
    out = bn(conv(out, w2), bn2)
    return jax.nn.relu(out + x_nchw)


if __name__ == "__main__":
    # Small shapes consistent with the module defaults: inplanes == planes,
    # stride=1, downsample=None -> identity residual.  W*C = 128 (lane-dense);
    # N=16 with block_n=2 -> grid of 8 steps (>=4 per v7x TensorCore).
    N, C, H, W = 16, 8, 16, 16
    key = jax.random.PRNGKey(0)
    k_x, k_w1, k_w2, k_g1, k_b1, k_g2, k_b2, k_m1, k_v1, k_m2, k_v2 = \
        jax.random.split(key, 11)

    x = jax.random.normal(k_x, (N, C, H, W), jnp.float32)
    w1 = 0.1 * jax.random.normal(k_w1, (C, C, 3, 3), jnp.float32)
    w2 = 0.1 * jax.random.normal(k_w2, (C, C, 3, 3), jnp.float32)

    bn1 = (1.0 + 0.1 * jax.random.normal(k_g1, (C,), jnp.float32),             # gamma
           0.1 * jax.random.normal(k_b1, (C,), jnp.float32),                   # beta
           0.1 * jax.random.normal(k_m1, (C,), jnp.float32),                   # running_mean
           1.0 + 0.1 * jax.nn.softplus(jax.random.normal(k_v1, (C,), jnp.float32)))  # running_var
    bn2 = (1.0 + 0.1 * jax.random.normal(k_g2, (C,), jnp.float32),
           0.1 * jax.random.normal(k_b2, (C,), jnp.float32),
           0.1 * jax.random.normal(k_m2, (C,), jnp.float32),
           1.0 + 0.1 * jax.nn.softplus(jax.random.normal(k_v2, (C,), jnp.float32)))

    ref = basic_block_ref(x, w1, bn1, w2, bn2)

    # Production bf16 MXU path (v6e/v7x-native): looser check vs f32 reference.
    out_bf16 = jax.block_until_ready(
        basic_block_pallas(x, w1, bn1, w2, bn2,
                           compute_dtype=jnp.bfloat16, block_n=2))
    assert out_bf16.shape == (N, C, H, W)
    assert jnp.allclose(out_bf16, ref, rtol=5e-2, atol=5e-2), \
        f"bf16 max abs err {jnp.max(jnp.abs(out_bf16 - ref))}"

    # f32 compute path: tight verification check.
    out_f32 = jax.block_until_ready(
        basic_block_pallas(x, w1, bn1, w2, bn2,
                           compute_dtype=jnp.float32, block_n=2))
    assert out_f32.shape == (N, C, H, W)
    assert jnp.allclose(out_f32, ref, rtol=2e-3, atol=2e-3), \
        f"f32 max abs err {jnp.max(jnp.abs(out_f32 - ref))}"

    print("KERNEL_OK")
</pallas_src>

<mosaic_0001>
module attributes {stable_mosaic.version = 11 : i64} {
  func.func @basic_block_kernel(%arg0: i32, %arg1: memref<2x16x128xf32, #tpu.memory_space<vmem>>, %arg2: memref<128x384xbf16, #tpu.memory_space<vmem>>, %arg3: memref<1x128xf32, #tpu.memory_space<vmem>>, %arg4: memref<128x384xbf16, #tpu.memory_space<vmem>>, %arg5: memref<1x128xf32, #tpu.memory_space<vmem>>, %arg6: memref<2x16x128xf32, #tpu.memory_space<vmem>>, %arg7: memref<56x128xbf16, #tpu.memory_space<vmem>>) attributes {dimension_semantics = [#tpu.dimension_semantics<parallel>], iteration_bounds = array<i64: 8>, scalar_prefetch = 0 : i64, scratch_operands = 1 : i64, tpu.core_type = #tpu.core_type<tc>, window_params = [{transform_indices = @transform_0, window_bounds = array<i64: 2, 16, 128>}, {pipeline_mode = #tpu.pipeline_mode<synchronous>, transform_indices = @transform_1, window_bounds = array<i64: 128, 384>}, {pipeline_mode = #tpu.pipeline_mode<synchronous>, transform_indices = @transform_2, window_bounds = array<i64: 1, 128>}, {pipeline_mode = #tpu.pipeline_mode<synchronous>, transform_indices = @transform_3, window_bounds = array<i64: 128, 384>}, {pipeline_mode = #tpu.pipeline_mode<synchronous>, transform_indices = @transform_4, window_bounds = array<i64: 1, 128>}, {transform_indices = @transform_5, window_bounds = array<i64: 2, 16, 128>}]} {
    %cst = arith.constant 0.000000e+00 : bf16
    %0 = vector.broadcast %cst : bf16 to vector<8x128xbf16>
    %c0 = arith.constant 0 : index
    %c0_0 = arith.constant 0 : index
    %1 = vector.load %arg7[%c0, %c0_0] : memref<56x128xbf16, #tpu.memory_space<vmem>>, vector<8x128xbf16>
    tpu.vector_store %arg7[%c0, %c0_0], %0 {strides = array<i32>} : memref<56x128xbf16, #tpu.memory_space<vmem>>, vector<8x128xbf16>,
    %c24 = arith.constant 24 : index
    %c0_1 = arith.constant 0 : index
    %2 = vector.load %arg7[%c24, %c0_1] : memref<56x128xbf16, #tpu.memory_space<vmem>>, vector<8x128xbf16>
    tpu.vector_store %arg7[%c24, %c0_1], %0 {strides = array<i32>} : memref<56x128xbf16, #tpu.memory_space<vmem>>, vector<8x128xbf16>,
    %c48 = arith.constant 48 : index
    %c0_2 = arith.constant 0 : index
    %3 = vector.load %arg7[%c48, %c0_2] : memref<56x128xbf16, #tpu.memory_space<vmem>>, vector<8x128xbf16>
    tpu.vector_store %arg7[%c48, %c0_2], %0 {strides = array<i32>} : memref<56x128xbf16, #tpu.memory_space<vmem>>, vector<8x128xbf16>,
    %c0_3 = arith.constant 0 : index
    %c0_4 = arith.constant 0 : index
    %c0_5 = arith.constant 0 : index
    %4 = vector.load %arg1[%c0_3, %c0_4, %c0_5] : memref<2x16x128xf32, #tpu.memory_space<vmem>>, vector<1x16x128xf32>
    %5 = vector.shape_cast %4 : vector<1x16x128xf32> to vector<16x128xf32>
    %6 = arith.truncf %5 : vector<16x128xf32> to vector<16x128xbf16>
    %c8 = arith.constant 8 : index
    %c0_6 = arith.constant 0 : index
    %7 = vector.load %arg7[%c8, %c0_6] : memref<56x128xbf16, #tpu.memory_space<vmem>>, vector<16x128xbf16>
    tpu.vector_store %arg7[%c8, %c0_6], %6 {strides = array<i32>} : memref<56x128xbf16, #tpu.memory_space<vmem>>, vector<16x128xbf16>,
    %c1 = arith.constant 1 : index
    %c0_7 = arith.constant 0 : index
    %c0_8 = arith.constant 0 : index
    %8 = vector.load %arg1[%c1, %c0_7, %c0_8] : memref<2x16x128xf32, #tpu.memory_space<vmem>>, vector<1x16x128xf32>
    %9 = vector.shape_cast %8 : vector<1x16x128xf32> to vector<16x128xf32>
    %10 = arith.truncf %9 : vector<16x128xf32> to vector<16x128xbf16>
    %c32 = arith.constant 32 : index
    %c0_9 = arith.constant 0 : index
    %11 = vector.load %arg7[%c32, %c0_9] : memref<56x128xbf16, #tpu.memory_space<vmem>>, vector<16x128xbf16>
    tpu.vector_store %arg7[%c32, %c0_9], %10 {strides = array<i32>} : memref<56x128xbf16, #tpu.memory_space<vmem>>, vector<16x128xbf16>,
    %c0_10 = arith.constant 0 : index
    %c0_11 = arith.constant 0 : index
    %12 = vector.load %arg7[%c0_10, %c0_11] : memref<56x128xbf16, #tpu.memory_space<vmem>>, vector<56x128xbf16>
    %c0_12 = arith.constant 0 : index
    %c0_13 = arith.constant 0 : index
    %13 = vector.load %arg2[%c0_12, %c0_13] : memref<128x384xbf16, #tpu.memory_space<vmem>>, vector<128x384xbf16>
    %cst_14 = arith.constant dense<0.000000e+00> : vector<56x384xf32>
    %14 = tpu.matmul %12, %13, %cst_14 {dimension_numbers = #tpu.dot_dimension_numbers<[1], [0], [0], [1], [0, 0, 1, 1], [], []>} : vector<56x128xbf16>, vector<128x384xbf16>, vector<56x384xf32> -> vector<56x384xf32>
    %15 = vector.extract_strided_slice %14 {offsets = [7, 0], sizes = [16, 128], strides = [1, 1]} : vector<56x384xf32> to vector<16x128xf32>
    %16 = vector.extract_strided_slice %14 {offsets = [8, 128], sizes = [16, 128], strides = [1, 1]} : vector<56x384xf32> to vector<16x128xf32>
    %17 = arith.addf %15, %16 : vector<16x128xf32>
    %18 = vector.extract_strided_slice %14 {offsets = [9, 256], sizes = [16, 128], strides = [1, 1]} : vector<56x384xf32> to vector<16x128xf32>
    %19 = arith.addf %17, %18 : vector<16x128xf32>
    %c0_15 = arith.constant 0 : index
    %c0_16 = arith.constant 0 : index
    %20 = vector.load %arg3[%c0_15, %c0_16] : memref<1x128xf32, #tpu.memory_space<vmem>>, vector<1x128xf32>
    %21 = vector.broadcast %20 : vector<1x128xf32> to vector<16x128xf32>
    %22 = arith.addf %19, %21 : vector<16x128xf32>
    %cst_17 = arith.constant 0.000000e+00 : f32
    %23 = vector.broadcast %cst_17 : f32 to vector<16x128xf32>
    %24 = arith.maximumf %22, %23 : vector<16x128xf32>
    %25 = arith.truncf %24 : vector<16x128xf32> to vector<16x128xbf16>
    %c8_18 = arith.constant 8 : index
    %c0_19 = arith.constant 0 : index
    %26 = vector.load %arg7[%c8_18, %c0_19] : memref<56x128xbf16, #tpu.memory_space<vmem>>, vector<16x128xbf16>
    tpu.vector_store %arg7[%c8_18, %c0_19], %25 {strides = array<i32>} : memref<56x128xbf16, #tpu.memory_space<vmem>>, vector<16x128xbf16>,
    %27 = vector.extract_strided_slice %14 {offsets = [31, 0], sizes = [16, 128], strides = [1, 1]} : vector<56x384xf32> to vector<16x128xf32>
    %28 = vector.extract_strided_slice %14 {offsets = [32, 128], sizes = [16, 128], strides = [1, 1]} : vector<56x384xf32> to vector<16x128xf32>
    %29 = arith.addf %27, %28 : vector<16x128xf32>
    %30 = vector.extract_strided_slice %14 {offsets = [33, 256], sizes = [16, 128], strides = [1, 1]} : vector<56x384xf32> to vector<16x128xf32>
    %31 = arith.addf %29, %30 : vector<16x128xf32>
    %c0_20 = arith.constant 0 : index
    %c0_21 = arith.constant 0 : index
    %32 = vector.load %arg3[%c0_20, %c0_21] : memref<1x128xf32, #tpu.memory_space<vmem>>, vector<1x128xf32>
    %33 = vector.broadcast %32 : vector<1x128xf32> to vector<16x128xf32>
    %34 = arith.addf %31, %33 : vector<16x128xf32>
    %cst_22 = arith.constant 0.000000e+00 : f32
    %35 = vector.broadcast %cst_22 : f32 to vector<16x128xf32>
    %36 = arith.maximumf %34, %35 : vector<16x128xf32>
    %37 = arith.truncf %36 : vector<16x128xf32> to vector<16x128xbf16>
    %c32_23 = arith.constant 32 : index
    %c0_24 = arith.constant 0 : index
    %38 = vector.load %arg7[%c32_23, %c0_24] : memref<56x128xbf16, #tpu.memory_space<vmem>>, vector<16x128xbf16>
    tpu.vector_store %arg7[%c32_23, %c0_24], %37 {strides = array<i32>} : memref<56x128xbf16, #tpu.memory_space<vmem>>, vector<16x128xbf16>,
    %c0_25 = arith.constant 0 : index
    %c0_26 = arith.constant 0 : index
    %39 = vector.load %arg7[%c0_25, %c0_26] : memref<56x128xbf16, #tpu.memory_space<vmem>>, vector<56x128xbf16>
    %c0_27 = arith.constant 0 : index
    %c0_28 = arith.constant 0 : index
    %40 = vector.load %arg4[%c0_27, %c0_28] : memref<128x384xbf16, #tpu.memory_space<vmem>>, vector<128x384xbf16>
    %cst_29 = arith.constant dense<0.000000e+00> : vector<56x384xf32>
    %41 = tpu.matmul %39, %40, %cst_29 {dimension_numbers = #tpu.dot_dimension_numbers<[1], [0], [0], [1], [0, 0, 1, 1], [], []>} : vector<56x128xbf16>, vector<128x384xbf16>, vector<56x384xf32> -> vector<56x384xf32>
    %42 = vector.extract_strided_slice %41 {offsets = [7, 0], sizes = [16, 128], strides = [1, 1]} : vector<56x384xf32> to vector<16x128xf32>
    %43 = vector.extract_strided_slice %41 {offsets = [8, 128], sizes = [16, 128], strides = [1, 1]} : vector<56x384xf32> to vector<16x128xf32>
    %44 = arith.addf %42, %43 : vector<16x128xf32>
    %45 = vector.extract_strided_slice %41 {offsets = [9, 256], sizes = [16, 128], strides = [1, 1]} : vector<56x384xf32> to vector<16x128xf32>
    %46 = arith.addf %44, %45 : vector<16x128xf32>
    %c0_30 = arith.constant 0 : index
    %c0_31 = arith.constant 0 : index
    %47 = vector.load %arg5[%c0_30, %c0_31] : memref<1x128xf32, #tpu.memory_space<vmem>>, vector<1x128xf32>
    %48 = vector.broadcast %47 : vector<1x128xf32> to vector<16x128xf32>
    %49 = arith.addf %46, %48 : vector<16x128xf32>
    %c0_32 = arith.constant 0 : index
    %c0_33 = arith.constant 0 : index
    %c0_34 = arith.constant 0 : index
    %50 = vector.load %arg1[%c0_32, %c0_33, %c0_34] : memref<2x16x128xf32, #tpu.memory_space<vmem>>, vector<1x16x128xf32>
    %51 = vector.shape_cast %50 : vector<1x16x128xf32> to vector<16x128xf32>
    %52 = arith.addf %49, %51 : vector<16x128xf32>
    %cst_35 = arith.constant 0.000000e+00 : f32
    %53 = vector.broadcast %cst_35 : f32 to vector<16x128xf32>
    %54 = arith.maximumf %52, %53 : vector<16x128xf32>
    %c0_36 = arith.constant 0 : index
    %c0_37 = arith.constant 0 : index
    %c0_38 = arith.constant 0 : index
    %55 = vector.load %arg6[%c0_36, %c0_37, %c0_38] : memref<2x16x128xf32, #tpu.memory_space<vmem>>, vector<1x16x128xf32>
    %56 = vector.shape_cast %55 : vector<1x16x128xf32> to vector<16x128xf32>
    %57 = vector.shape_cast %54 : vector<16x128xf32> to vector<1x16x128xf32>
    tpu.vector_store %arg6[%c0_36, %c0_37, %c0_38], %57 {strides = array<i32>} : memref<2x16x128xf32, #tpu.memory_space<vmem>>, vector<1x16x128xf32>,
    %58 = vector.extract_strided_slice %41 {offsets = [31, 0], sizes = [16, 128], strides = [1, 1]} : vector<56x384xf32> to vector<16x128xf32>
    %59 = vector.extract_strided_slice %41 {offsets = [32, 128], sizes = [16, 128], strides = [1, 1]} : vector<56x384xf32> to vector<16x128xf32>
    %60 = arith.addf %58, %59 : vector<16x128xf32>
    %61 = vector.extract_strided_slice %41 {offsets = [33, 256], sizes = [16, 128], strides = [1, 1]} : vector<56x384xf32> to vector<16x128xf32>
    %62 = arith.addf %60, %61 : vector<16x128xf32>
    %c0_39 = arith.constant 0 : index
    %c0_40 = arith.constant 0 : index
    %63 = vector.load %arg5[%c0_39, %c0_40] : memref<1x128xf32, #tpu.memory_space<vmem>>, vector<1x128xf32>
    %64 = vector.broadcast %63 : vector<1x128xf32> to vector<16x128xf32>
    %65 = arith.addf %62, %64 : vector<16x128xf32>
    %c1_41 = arith.constant 1 : index
    %c0_42 = arith.constant 0 : index
    %c0_43 = arith.constant 0 : index
    %66 = vector.load %arg1[%c1_41, %c0_42, %c0_43] : memref<2x16x128xf32, #tpu.memory_space<vmem>>, vector<1x16x128xf32>
    %67 = vector.shape_cast %66 : vector<1x16x128xf32> to vector<16x128xf32>
    %68 = arith.addf %65, %67 : vector<16x128xf32>
    %cst_44 = arith.constant 0.000000e+00 : f32
    %69 = vector.broadcast %cst_44 : f32 to vector<16x128xf32>
    %70 = arith.maximumf %68, %69 : vector<16x128xf32>
    %c1_45 = arith.constant 1 : index
    %c0_46 = arith.constant 0 : index
    %c0_47 = arith.constant 0 : index
    %71 = vector.load %arg6[%c1_45, %c0_46, %c0_47] : memref<2x16x128xf32, #tpu.memory_space<vmem>>, vector<1x16x128xf32>
    %72 = vector.shape_cast %71 : vector<1x16x128xf32> to vector<16x128xf32>
    %73 = vector.shape_cast %70 : vector<16x128xf32> to vector<1x16x128xf32>
    tpu.vector_store %arg6[%c1_45, %c0_46, %c0_47], %73 {strides = array<i32>} : memref<2x16x128xf32, #tpu.memory_space<vmem>>, vector<1x16x128xf32>,
    return
  }
  func.func @transform_0(%arg0: i32) -> (i32, i32, i32) {
    %c0_i32 = arith.constant 0 : i32
    %c0_i32_0 = arith.constant 0 : i32
    %c0_i32_1 = arith.constant 0 : i32
    return %arg0, %c0_i32, %c0_i32_0 : i32, i32, i32
  }
  func.func @transform_1(%arg0: i32) -> (i32, i32) {
    %c0_i32 = arith.constant 0 : i32
    %c0_i32_0 = arith.constant 0 : i32
    %c0_i32_1 = arith.constant 0 : i32
    return %c0_i32, %c0_i32_0 : i32, i32
  }
  func.func @transform_2(%arg0: i32) -> (i32, i32) {
    %c0_i32 = arith.constant 0 : i32
    %c0_i32_0 = arith.constant 0 : i32
    %c0_i32_1 = arith.constant 0 : i32
    return %c0_i32, %c0_i32_0 : i32, i32
  }
  func.func @transform_3(%arg0: i32) -> (i32, i32) {
    %c0_i32 = arith.constant 0 : i32
    %c0_i32_0 = arith.constant 0 : i32
    %c0_i32_1 = arith.constant 0 : i32
    return %c0_i32, %c0_i32_0 : i32, i32
  }
  func.func @transform_4(%arg0: i32) -> (i32, i32) {
    %c0_i32 = arith.constant 0 : i32
    %c0_i32_0 = arith.constant 0 : i32
    %c0_i32_1 = arith.constant 0 : i32
    return %c0_i32, %c0_i32_0 : i32, i32
  }
  func.func @transform_5(%arg0: i32) -> (i32, i32, i32) {
    %c0_i32 = arith.constant 0 : i32
    %c0_i32_0 = arith.constant 0 : i32
    %c0_i32_1 = arith.constant 0 : i32
    return %arg0, %c0_i32, %c0_i32_0 : i32, i32, i32
  }
}

</mosaic_0001>

<llo_original>
// kernel: tpu_custom_call.1
$region0: #{tpu_custom_call.1}
  #allocation0 [shape = 'u32[]', space=smem, size = 0x4, offset = 0x4, fixed_abs, tag = 'smem constant byte address 0x4 - core index']
  #allocation1 [shape = 'u32[144,128]{1,0:T(1,128)}', space=vmem, size = 0x12000, scoped, tag = 'internal scratch']
  #allocation2 [shape = 'bf16[56,128]{1,0:T(8,128)(2,1)}', space=vmem, size = 0x3800, scoped, tag = 'scratch operand']
  %s0 = inlined_call_operand.hbm [shape: f32[16,16,128], index: 0, kind: input, shape index: {}]
  %s1 = inlined_call_operand.hbm [shape: bf16[128,384], index: 1, kind: input, shape index: {}]
  %s2 = inlined_call_operand.vmem [shape: f32[1,128], index: 2, kind: input, shape index: {}]
  %s3 = inlined_call_operand.hbm [shape: bf16[128,384], index: 3, kind: input, shape index: {}]
  %s4 = inlined_call_operand.vmem [shape: f32[1,128], index: 4, kind: input, shape index: {}]
  %s5 = inlined_call_operand.hbm [shape: f32[16,16,128], index: 5, kind: output, shape index: {}]
  %s6 = sld [smem:[#allocation0]]
  $region65: #{tpu_custom_call.1} parent=0
    _
  %s8 = ssub.s32 1, %s6
  %s9 = scalar_select 0, %s8, %s6
  $region1: #{tpu_custom_call.1} parent=0
    #allocation3 [shape = 'u8[32768]{0}', space=vmem, size = 0x8000, scoped, tag = 'input window, operand 0']
    #allocation4 [shape = 's32[2]{0}', space=sflag, size = 0x8, scoped, tag = 'scoped memory for tpu_custom_call.1']
    #allocation5 [shape = 's32[2]{0}', space=sflag, size = 0x8, scoped, tag = 'scoped memory for tpu_custom_call.1']
    #allocation6 [shape = 'u8[98304]{0}', space=vmem, size = 0x18000, scoped, tag = 'input window, operand 1, single buffered']
    #allocation7 [shape = 's32[1]{0}', space=sflag, size = 0x4, scoped, tag = 'scoped memory for tpu_custom_call.1']
    #allocation8 [shape = 'u8[98304]{0}', space=vmem, size = 0x18000, scoped, tag = 'input window, operand 3, single buffered']
    #allocation9 [shape = 'u8[32768]{0}', space=vmem, size = 0x8000, scoped, tag = 'output window, operand 0']
    %10 = vsyncpa [#allocation4], 0
    %s11 = scalar_lea.sflag [#allocation4], 1
    %12 = vsyncpa %s11, 0
    %13 = vsyncpa [#allocation7], 0
    %14 = vsyncpa [#allocation5], 0
    %s15 = scalar_lea.sflag [#allocation5], 1
    %16 = vsyncpa %s15, 0
    loop: start=0, step=1, limit=10
    $region2: #{tpu_custom_call.1} parent=1 // loop_pre_header
      _
    $region3: #{tpu_custom_call.1} parent=1 // loop_header
      %s18 = sphi 0, %s22
      %p19 = scmp.ge.s32.totalorder %s18, 10
      %s28 = sphi 0, %s30
      %s31 = sphi 0, %s28
      %s32 = sphi 0, %s31
      %s48 = sphi 0, %s32
      %s52 = sphi 0, %s52
      %s54 = sphi 0, %s52
      %s55 = sphi 0, %s54
      %s69 = sphi 0, %s55
      %s73 = sphi 0, %s73
      %s75 = sphi 0, %s73
      %s76 = sphi 0, %s75
      %s90 = sphi 0, %s76
      %s94 = sphi 0, %s94
      %s96 = sphi 0, %s94
      %s97 = sphi 0, %s96
      %s111 = sphi 0, %s97
      %s115 = sphi 0, %s115
      %s117 = sphi 0, %s115
      %s118 = sphi 0, %s117
      %s132 = sphi 0, %s118
      %s138 = sphi 0, %s140
      %s141 = sphi 0, %s138
      %s142 = sphi 0, %s141
      %s158 = sphi 0, %s142
    $region4: #{tpu_custom_call.1} parent=1 // loop_header_branch
      %21 = sbr.rel (%p19) target = $region8
    $region5: #{tpu_custom_call.1} parent=1 // loop_body
      %s23 = ssub.s32 %s18, 1
      %s24 = ssub.s32 %s18, 2
      %s25 = sadd.s32 %s18, 1
      %s26 = ssub.s32 %s18, %s25
      %p27 = scmp.eq.s32.totalorder %s26, 0
      %s29 = sadd.s32 %s28, 1
      %s30 = scalar_select %p27, %s28, %s29
      %p33 = pneg %p27
      %p34 = scmp.eq.s32.totalorder %s18, 7
      %p35 = por %p33, %p34
      %p36 = scmp.ne.s32.totalorder %s28, %s31
      %p37 = scmp.eq.s32.totalorder %s18, 0
      %p38 = por %p36, %p37
      %p39 = scmp.ne.s32.totalorder %s28, %s31
      %p40 = scmp.eq.s32.totalorder %s23, 7
      %p41 = por %p39, %p40
      %p42 = scmp.ne.s32.totalorder %s31, %s32
      %p43 = scmp.eq.s32.totalorder %s23, 0
      %p44 = por %p42, %p43
      %p45 = scmp.ne.s32.totalorder %s31, %s32
      %p46 = scmp.eq.s32.totalorder %s24, 7
      %p47 = por %p45, %p46
      %p49 = scmp.ne.s32.totalorder %s32, %s48
      %p50 = scmp.eq.s32.totalorder %s24, 0
      %p51 = por %p49, %p50
      %s53 = sadd.s32 %s52, 1
      %p56 = scmp.eq.s32.totalorder %s18, 7
      %p57 = scmp.ne.s32.totalorder %s52, %s54
      %p58 = scmp.eq.s32.totalorder %s18, 0
      %p59 = por %p57, %p58
      %p60 = scmp.ne.s32.totalorder %s52, %s54
      %p61 = scmp.eq.s32.totalorder %s23, 7
      %p62 = por %p60, %p61
      %p63 = scmp.ne.s32.totalorder %s54, %s55
      %p64 = scmp.eq.s32.totalorder %s23, 0
      %p65 = por %p63, %p64
      %p66 = scmp.ne.s32.totalorder %s54, %s55
      %p67 = scmp.eq.s32.totalorder %s24, 7
      %p68 = por %p66, %p67
      %p70 = scmp.ne.s32.totalorder %s55, %s69
      %p71 = scmp.eq.s32.totalorder %s24, 0
      %p72 = por %p70, %p71
      %s74 = sadd.s32 %s73, 1
      %p77 = scmp.eq.s32.totalorder %s18, 7
      %p78 = scmp.ne.s32.totalorder %s73, %s75
      %p79 = scmp.eq.s32.totalorder %s18, 0
      %p80 = por %p78, %p79
      %p81 = scmp.ne.s32.totalorder %s73, %s75
      %p82 = scmp.eq.s32.totalorder %s23, 7
      %p83 = por %p81, %p82
      %p84 = scmp.ne.s32.totalorder %s75, %s76
      %p85 = scmp.eq.s32.totalorder %s23, 0
      %p86 = por %p84, %p85
      %p87 = scmp.ne.s32.totalorder %s75, %s76
      %p88 = scmp.eq.s32.totalorder %s24, 7
      %p89 = por %p87, %p88
      %p91 = scmp.ne.s32.totalorder %s76, %s90
      %p92 = scmp.eq.s32.totalorder %s24, 0
      %p93 = por %p91, %p92
      %s95 = sadd.s32 %s94, 1
      %p98 = scmp.eq.s32.totalorder %s18, 7
      %p99 = scmp.ne.s32.totalorder %s94, %s96
      %p100 = scmp.eq.s32.totalorder %s18, 0
      %p101 = por %p99, %p100
      %p102 = scmp.ne.s32.totalorder %s94, %s96
      %p103 = scmp.eq.s32.totalorder %s23, 7
      %p104 = por %p102, %p103
      %p105 = scmp.ne.s32.totalorder %s96, %s97
      %p106 = scmp.eq.s32.totalorder %s23, 0
      %p107 = por %p105, %p106
      %p108 = scmp.ne.s32.totalorder %s96, %s97
      %p109 = scmp.eq.s32.totalorder %s24, 7
      %p110 = por %p108, %p109
      %p112 = scmp.ne.s32.totalorder %s97, %s111
      %p113 = scmp.eq.s32.totalorder %s24, 0
      %p114 = por %p112, %p113
      %s116 = sadd.s32 %s115, 1
      %p119 = scmp.eq.s32.totalorder %s18, 7
      %p120 = scmp.ne.s32.totalorder %s115, %s117
      %p121 = scmp.eq.s32.totalorder %s18, 0
      %p122 = por %p120, %p121
      %p123 = scmp.ne.s32.totalorder %s115, %s117
      %p124 = scmp.eq.s32.totalorder %s23, 7
      %p125 = por %p123, %p124
      %p126 = scmp.ne.s32.totalorder %s117, %s118
      %p127 = scmp.eq.s32.totalorder %s23, 0
      %p128 = por %p126, %p127
      %p129 = scmp.ne.s32.totalorder %s117, %s118
      %p130 = scmp.eq.s32.totalorder %s24, 7
      %p131 = por %p129, %p130
      %p133 = scmp.ne.s32.totalorder %s118, %s132
      %p134 = scmp.eq.s32.totalorder %s24, 0
      %p135 = por %p133, %p134
      %s136 = ssub.s32 %s18, %s25
      %p137 = scmp.eq.s32.totalorder %s136, 0
      %s139 = sadd.s32 %s138, 1
      %s140 = scalar_select %p137, %s138, %s139
      %p143 = pneg %p137
      %p144 = scmp.eq.s32.totalorder %s18, 7
      %p145 = por %p143, %p144
      %p146 = scmp.ne.s32.totalorder %s138, %s141
      %p147 = scmp.eq.s32.totalorder %s18, 0
      %p148 = por %p146, %p147
      %p149 = scmp.ne.s32.totalorder %s138, %s141
      %p150 = scmp.eq.s32.totalorder %s23, 7
      %p151 = por %p149, %p150
      %p152 = scmp.ne.s32.totalorder %s141, %s142
      %p153 = scmp.eq.s32.totalorder %s23, 0
      %p154 = por %p152, %p153
      %p155 = scmp.ne.s32.totalorder %s141, %s142
      %p156 = scmp.eq.s32.totalorder %s24, 7
      %p157 = por %p155, %p156
      %p159 = scmp.ne.s32.totalorder %s142, %s158
      %p160 = scmp.eq.s32.totalorder %s24, 0
      %p161 = por %p159, %p160
      %p162 = scmp.le.s32.totalorder 1, %s18
      %p163 = scmp.lt.s32.totalorder %s18, 9
      %p164 = pnand %p162, %p163
      %p165 = pneg %p164
      // Predicated region
      $region9: #{tpu_custom_call.1} parent=5 // pred_check
        _
      $region10: #{tpu_custom_call.1} parent=5 // pred_check_branch
        %167 = sbr.rel (%p164) target = $region12
      $region11: #{tpu_custom_call.1} parent=5 // pred_region
        %s168 = ssub.s32 %s18, 1
        // Predicated region
        $region13: #{tpu_custom_call.1} parent=11 // pred_check
          %p169 = pneg %p65
        $region14: #{tpu_custom_call.1} parent=11 // pred_check_branch
          %171 = sbr.rel (%p169) target = $region16
        $region15: #{tpu_custom_call.1} parent=11 // pred_region
          %s173 = ssub.s32 3072, 3072
          %174 = vsyncadd [#allocation7], %s173
          %s175 = sshll.u32 [#allocation6], 4
          %s176 = int_to_ptr.vmem [resolvable:$true] %s175
          %181 = dma.hbm_to_vmem [thread:$0]  %s1, 3072, %s176, [#allocation7], 192, 192, 12
        $region16: #{tpu_custom_call.1} parent=11 // pred_fallthru
          _
        // Predicated region
        $region17: #{tpu_custom_call.1} parent=11 // pred_check
          %p182 = pneg %p86
        $region18: #{tpu_custom_call.1} parent=11 // pred_check_branch
          %184 = sbr.rel (%p182) target = $region20
        $region19: #{tpu_custom_call.1} parent=11 // pred_region
          _
        $region20: #{tpu_custom_call.1} parent=11 // pred_fallthru
          _
        // Predicated region
        $region21: #{tpu_custom_call.1} parent=11 // pred_check
          %p185 = pneg %p107
        $region22: #{tpu_custom_call.1} parent=11 // pred_check_branch
          %187 = sbr.rel (%p185) target = $region24
        $region23: #{tpu_custom_call.1} parent=11 // pred_region
          %s189 = ssub.s32 3072, 3072
          %190 = vsyncadd [#allocation7], %s189
          %s191 = sshll.u32 [#allocation8], 4
          %s192 = int_to_ptr.vmem [resolvable:$true] %s191
          %197 = dma.hbm_to_vmem [thread:$0]  %s3, 3072, %s192, [#allocation7], 192, 192, 12
        $region24: #{tpu_custom_call.1} parent=11 // pred_fallthru
          _
        // Predicated region
        $region25: #{tpu_custom_call.1} parent=11 // pred_check
          %p198 = pneg %p128
        $region26: #{tpu_custom_call.1} parent=11 // pred_check_branch
          %200 = sbr.rel (%p198) target = $region28
        $region27: #{tpu_custom_call.1} parent=11 // pred_region
          _
        $region28: #{tpu_custom_call.1} parent=11 // pred_fallthru
          _
      $region12: #{tpu_custom_call.1} parent=5 // pred_fallthru
        _
      %p201 = scmp.lt.s32.totalorder %s18, 8
      // Predicated region
      $region29: #{tpu_custom_call.1} parent=5 // pred_check
        %p202 = pneg %p201
      $region30: #{tpu_custom_call.1} parent=5 // pred_check_branch
        %204 = sbr.rel (%p202) target = $region32
      $region31: #{tpu_custom_call.1} parent=5 // pred_region
        // Predicated region
        $region33: #{tpu_custom_call.1} parent=31 // pred_check
          %p205 = pneg %p38
        $region34: #{tpu_custom_call.1} parent=31 // pred_check_branch
          %207 = sbr.rel (%p205) target = $region36
        $region35: #{tpu_custom_call.1} parent=31 // pred_region
          %s208 = sand.u32 %s28, 1
          %s209 = scalar_lea.sflag [#allocation4], %s208
          %s210 = sand.u32 %s28, 1
          %s211 = smul.addr %s210, 32
          %s212 = scalar_lea.vmem [#allocation3], %s211
          %s213 = smul.u32 2, %s18
          %s215 = ssub.s32 512, 512
          %216 = vsyncadd %s209, %s215
          %s217 = smul.addr %s213, 2
          %s218 = smul.addr %s217, 128
          %s219 = scalar_lea.hbm %s0, %s218
          %s220 = sshll.u32 %s212, 4
          %s221 = int_to_ptr.vmem [resolvable:$true] %s220
          %226 = dma.hbm_to_vmem [thread:$0]  %s219, 512, %s221, %s209, 128, 128, 8
        $region36: #{tpu_custom_call.1} parent=31 // pred_fallthru
          _
      $region32: #{tpu_custom_call.1} parent=5 // pred_fallthru
        _
      %p227 = scmp.le.s32.totalorder 1, %s18
      %p228 = scmp.lt.s32.totalorder %s18, 9
      %p229 = pnand %p227, %p228
      %p230 = pneg %p229
      // Predicated region
      $region37: #{tpu_custom_call.1} parent=5 // pred_check
        _
      $region38: #{tpu_custom_call.1} parent=5 // pred_check_branch
        %232 = sbr.rel (%p229) target = $region40
      $region39: #{tpu_custom_call.1} parent=5 // pred_region
        %s233 = ssub.s32 %s18, 1
        %s234 = sand.u32 %s31, 1
        %s235 = scalar_lea.sflag [#allocation4], %s234
        %s236 = sand.u32 %s31, 1
        %s237 = smul.addr %s236, 32
        %s238 = scalar_lea.vmem [#allocation3], %s237
        // Predicated region
        $region41: #{tpu_custom_call.1} parent=39 // pred_check
          %p239 = pneg %p44
        $region42: #{tpu_custom_call.1} parent=39 // pred_check_branch
          %241 = sbr.rel (%p239) target = $region44
        $region43: #{tpu_custom_call.1} parent=39 // pred_region
          %242 = dma.done %s235, 512
        $region44: #{tpu_custom_call.1} parent=39 // pred_fallthru
          _
        // Predicated region
        $region45: #{tpu_custom_call.1} parent=39 // pred_check
          %p243 = pneg %p65
        $region46: #{tpu_custom_call.1} parent=39 // pred_check_branch
          %245 = sbr.rel (%p243) target = $region48
        $region47: #{tpu_custom_call.1} parent=39 // pred_region
          %246 = dma.done [#allocation7], 3072
        $region48: #{tpu_custom_call.1} parent=39 // pred_fallthru
          _
        // Predicated region
        $region49: #{tpu_custom_call.1} parent=39 // pred_check
          %p247 = pneg %p107
        $region50: #{tpu_custom_call.1} parent=39 // pred_check_branch
          %249 = sbr.rel (%p247) target = $region52
        $region51: #{tpu_custom_call.1} parent=39 // pred_region
          %250 = dma.done [#allocation7], 3072
        $region52: #{tpu_custom_call.1} parent=39 // pred_fallthru
          _
        %s251 = sand.u32 %s31, 1
        %s252 = scalar_lea.sflag [#allocation4], %s251
        %s253 = sand.u32 %s31, 1
        %s254 = smul.addr %s253, 32
        %s255 = scalar_lea.vmem [#allocation3], %s254
        %p256 = pneg %p44
        %p257 = pneg %p41
        %p258 = pneg %p65
        %p259 = pneg %p62
        %p260 = pneg %p86
        %p261 = pneg %p83
        %p262 = pneg %p107
        %p263 = pneg %p104
        %p264 = pneg %p128
        %p265 = pneg %p125
        %p266 = pneg %p154
        %p267 = pneg %p151
        %s268 = sand.u32 %s141, 1
        %s269 = scalar_lea.sflag [#allocation5], %s268
        %s270 = sand.u32 %s141, 1
        %s271 = smul.addr %s270, 32
        %s272 = scalar_lea.vmem [#allocation9], %s271
        %s273 = smul.u32 2, %s23
        %s274 = smul.u32 2, %s23
        %276 = vst [vmem:[#allocation2] sm:$0xf] 0
        %277 = vst [vmem:[#allocation2 + $0xc] sm:$0xf] 0
        %278 = vst [vmem:[#allocation2 + $0x18] sm:$0xf] 0
        %v279 = vld [vmem:[%s238] sm:$0xff]
        %v280 = vld [vmem:[%s238 + $0x8] sm:$0xff]
        %v281 = vpack.c.bf16 %v280, %v279
        %v283 = vunpack.c.l.b16 %v281
        %v284 = vunpack.c.h.b16 %v281
        %v285 = vpack.c.b16 %v283, %v283
        %v286 = vpack.c.b16 %v284, %v284
        %289 = vst [vmem:[#allocation2 + $0x4] sm:$0xf] %v285
        %290 = vst [vmem:[#allocation2 + $0x8] sm:$0xf] %v286
        %s291 = scalar_lea.vmem %s238, 16 [#allocation3]
        %v292 = vld [vmem:[%s291] sm:$0xff]
        %v293 = vld [vmem:[%s291 + $0x8] sm:$0xff]
        %v294 = vpack.c.bf16 %v293, %v292
        %v296 = vunpack.c.l.b16 %v294
        %v297 = vunpack.c.h.b16 %v294
        %v298 = vpack.c.b16 %v296, %v296
        %v299 = vpack.c.b16 %v297, %v297
        %302 = vst [vmem:[#allocation2 + $0x10] sm:$0xf] %v298
        %303 = vst [vmem:[#allocation2 + $0x14] sm:$0xf] %v299
        %v304 = vld [vmem:[#allocation2] sm:$0xf]
        %v305 = vld [vmem:[#allocation2 + $0x4] sm:$0xf]
        %v306 = vld [vmem:[#allocation2 + $0x8] sm:$0xf]
        %v307 = vld [vmem:[#allocation2 + $0xc] sm:$0xf]
        %v308 = vld [vmem:[#allocation2 + $0x10] sm:$0xf]
        %v309 = vld [vmem:[#allocation2 + $0x14] sm:$0xf]
        %v310 = vld [vmem:[#allocation2 + $0x18] sm:$0xf]
        %v311 = vld [vmem:[#allocation6] sm:$0xff]
        %v312 = vld [vmem:[#allocation6 + $0x8] sm:$0xf]
        %v313 = vld [vmem:[#allocation6 + $0xc] sm:$0xff]
        %v314 = vld [vmem:[#allocation6 + $0x14] sm:$0xf]
        %v315 = vld [vmem:[#allocation6 + $0x18] sm:$0xff]
        %v316 = vld [vmem:[#allocation6 + $0x20] sm:$0xf]
        %v317 = vld [vmem:[#allocation6 + $0x24] sm:$0xff]
        %v318 = vld [vmem:[#allocation6 + $0x2c] sm:$0xf]
        %v319 = vld [vmem:[#allocation6 + $0x30] sm:$0xff]
        %v320 = vld [vmem:[#allocation6 + $0x38] sm:$0xf]
        %v321 = vld [vmem:[#allocation6 + $0x3c] sm:$0xff]
        %v322 = vld [vmem:[#allocation6 + $0x44] sm:$0xf]
        %v323 = vld [vmem:[#allocation6 + $0x48] sm:$0xff]
        %v324 = vld [vmem:[#allocation6 + $0x50] sm:$0xf]
        %v325 = vld [vmem:[#allocation6 + $0x54] sm:$0xff]
        %v326 = vld [vmem:[#allocation6 + $0x5c] sm:$0xf]
        %v327 = vld [vmem:[#allocation6 + $0x60] sm:$0xff]
        %v328 = vld [vmem:[#allocation6 + $0x68] sm:$0xf]
        %v329 = vld [vmem:[#allocation6 + $0x6c] sm:$0xff]
        %v330 = vld [vmem:[#allocation6 + $0x74] sm:$0xf]
        %v331 = vld [vmem:[#allocation6 + $0x78] sm:$0xff]
        %v332 = vld [vmem:[#allocation6 + $0x80] sm:$0xf]
        %v333 = vld [vmem:[#allocation6 + $0x84] sm:$0xff]
        %v334 = vld [vmem:[#allocation6 + $0x8c] sm:$0xf]
        %v335 = vld [vmem:[#allocation6 + $0x90] sm:$0xff]
        %v336 = vld [vmem:[#allocation6 + $0x98] sm:$0xf]
        %v337 = vld [vmem:[#allocation6 + $0x9c] sm:$0xff]
        %v338 = vld [vmem:[#allocation6 + $0xa4] sm:$0xf]
        %v339 = vld [vmem:[#allocation6 + $0xa8] sm:$0xff]
        %v340 = vld [vmem:[#allocation6 + $0xb0] sm:$0xf]
        %v341 = vld [vmem:[#allocation6 + $0xb4] sm:$0xff]
        %v342 = vld [vmem:[#allocation6 + $0xbc] sm:$0xf]
        %v350 = vunpack.c.l.b16 %v304
        %v351 = vunpack.c.l.b16 %v305
        %v352 = vunpack.c.l.b16 %v306
        %v353 = vunpack.c.l.b16 %v307
        %v354 = vunpack.c.l.b16 %v308
        %v355 = vunpack.c.l.b16 %v309
        %v356 = vunpack.c.l.b16 %v310
        %v357 = vpack.c.b16 %v351, %v350
        %v358 = vpack.c.b16 %v353, %v352
        %v359 = vpack.c.b16 %v355, %v354
        %v360 = vpack.c.b16 %v356, %v356
        %v397 = vunpack.c.l.b16 %v311
        %v398 = vunpack.c.h.b16 %v311
        %v399 = vunpack.c.l.b16 %v312
        %v400 = vunpack.c.l.b16 %v313
        %v401 = vunpack.c.h.b16 %v313
        %v402 = vunpack.c.l.b16 %v314
        %v403 = vunpack.c.l.b16 %v315
        %v404 = vunpack.c.h.b16 %v315
        %v405 = vunpack.c.l.b16 %v316
        %v406 = vunpack.c.l.b16 %v317
        %v407 = vunpack.c.h.b16 %v317
        %v408 = vunpack.c.l.b16 %v318
        %v409 = vunpack.c.l.b16 %v319
        %v410 = vunpack.c.h.b16 %v319
        %v411 = vunpack.c.l.b16 %v320
        %v412 = vunpack.c.l.b16 %v321
        %v413 = vunpack.c.h.b16 %v321
        %v414 = vunpack.c.l.b16 %v322
        %v415 = vunpack.c.l.b16 %v323
        %v416 = vunpack.c.h.b16 %v323
        %v417 = vunpack.c.l.b16 %v324
        %v418 = vunpack.c.l.b16 %v325
        %v419 = vunpack.c.h.b16 %v325
        %v420 = vunpack.c.l.b16 %v326
        %v421 = vunpack.c.l.b16 %v327
        %v422 = vunpack.c.h.b16 %v327
        %v423 = vunpack.c.l.b16 %v328
        %v424 = vunpack.c.l.b16 %v329
        %v425 = vunpack.c.h.b16 %v329
        %v426 = vunpack.c.l.b16 %v330
        %v427 = vunpack.c.l.b16 %v331
        %v428 = vunpack.c.h.b16 %v331
        %v429 = vunpack.c.l.b16 %v332
        %v430 = vunpack.c.l.b16 %v333
        %v431 = vunpack.c.h.b16 %v333
        %v432 = vunpack.c.l.b16 %v334
        %v433 = vunpack.c.l.b16 %v335
        %v434 = vunpack.c.h.b16 %v335
        %v435 = vunpack.c.l.b16 %v336
        %v436 = vunpack.c.l.b16 %v337
        %v437 = vunpack.c.h.b16 %v337
        %v438 = vunpack.c.l.b16 %v338
        %v439 = vunpack.c.l.b16 %v339
        %v440 = vunpack.c.h.b16 %v339
        %v441 = vunpack.c.l.b16 %v340
        %v442 = vunpack.c.l.b16 %v341
        %v443 = vunpack.c.h.b16 %v341
        %v444 = vunpack.c.l.b16 %v342
        %v445 = vpack.c.b16 %v400, %v397
        %v446 = vpack.c.b16 %v401, %v398
        %v447 = vpack.c.b16 %v402, %v399
        %v448 = vpack.c.b16 %v406, %v403
        %v449 = vpack.c.b16 %v407, %v404
        %v450 = vpack.c.b16 %v408, %v405
        %v451 = vpack.c.b16 %v412, %v409
        %v452 = vpack.c.b16 %v413, %v410
        %v453 = vpack.c.b16 %v414, %v411
        %v454 = vpack.c.b16 %v418, %v415
        %v455 = vpack.c.b16 %v419, %v416
        %v456 = vpack.c.b16 %v420, %v417
        %v457 = vpack.c.b16 %v424, %v421
        %v458 = vpack.c.b16 %v425, %v422
        %v459 = vpack.c.b16 %v426, %v423
        %v460 = vpack.c.b16 %v430, %v427
        %v461 = vpack.c.b16 %v431, %v428
        %v462 = vpack.c.b16 %v432, %v429
        %v463 = vpack.c.b16 %v436, %v433
        %v464 = vpack.c.b16 %v437, %v434
        %v465 = vpack.c.b16 %v438, %v435
        %v466 = vpack.c.b16 %v442, %v439
        %v467 = vpack.c.b16 %v443, %v440
        %v468 = vpack.c.b16 %v444, %v441
        %493 = vmatprep.subr.bf16.mxu0 %v467
        %494 = vmatpush1.bf16.msra.mxu0 %v466
        %495 = vmatprep.subr.bf16.mxu0 %v464
        %496 = vmatpush1.bf16.msra.mxu0 %v463
        %497 = vmatprep.subr.bf16.mxu0 %v461
        %498 = vmatpush1.bf16.msra.mxu0 %v460
        %499 = vmatprep.subr.bf16.mxu0 %v458
        %500 = vmatpush1.bf16.msra.mxu0 %v457
        %501 = vmatprep.subr.bf16.mxu0 %v455
        %502 = vmatpush1.bf16.msra.mxu0 %v454
        %503 = vmatprep.subr.bf16.mxu0 %v452
        %504 = vmatpush1.bf16.msra.mxu0 %v451
        %505 = vmatprep.subr.bf16.mxu0 %v449
        %506 = vmatpush1.bf16.msra.mxu0 %v448
        %507 = vmatprep.subr.bf16.mxu0 %v446
        %508 = vmatpush1.bf16.msra.mxu0 %v445
        %509 = vmatprep.subr.bf16.mxu0 0
        %510 = vmatpush2.bf16.msra.mxu0 0
        %511 = vmatprep.subr.bf16.mxu0 0
        %512 = vmatpush2.bf16.msra.mxu0 0
        %513 = vmatprep.subr.bf16.mxu0 0
        %514 = vmatpush2.bf16.msra.mxu0 0
        %515 = vmatprep.subr.bf16.mxu0 0
        %516 = vmatpush2.bf16.msra.mxu0 0
        %517 = vmatprep.subr.bf16.mxu0 0
        %518 = vmatpush2.bf16.msra.mxu0 0
        %519 = vmatprep.subr.bf16.mxu0 0
        %520 = vmatpush2.bf16.msra.mxu0 0
        %521 = vmatprep.subr.bf16.mxu0 0
        %522 = vmatpush2.bf16.msra.mxu0 0
        %523 = vmatprep.subr.bf16.mxu0 0
        %524 = vmatpush2.bf16.msra.mxu0 0
        %525 = vmatprep.mubr.bf16.mxu0 0
        %526 = vmatmul.mubr.bf16.gmra.mxu0 %v357
        %v527 = vpop.f32.mrf.mxu0
        %v528 = vadd.f32 0.0, %v527
        %v529 = vpop.f32.mrf.mxu0
        %v530 = vpop.f32.mrf.mxu0
        %v531 = vadd.f32 0.0, %v530
        %v532 = vpop.f32.mrf.mxu0
        %v533 = vadd.f32 0.0, %v532
        %534 = vmatprep.mubr.bf16.mxu0 0
        %535 = vmatmul.mubr.bf16.gmra.mxu0 %v358
        %v536 = vpop.f32.mrf.mxu0
        %v537 = vadd.f32 0.0, %v536
        %v538 = vpop.f32.mrf.mxu0
        %v539 = vadd.f32 0.0, %v538
        %v540 = vpop.f32.mrf.mxu0
        %v541 = vadd.f32 0.0, %v540
        %v542 = vpop.f32.mrf.mxu0
        %543 = vmatprep.mubr.bf16.mxu0 0
        %544 = vmatmul.mubr.bf16.gmra.mxu0 %v359
        %v545 = vpop.f32.mrf.mxu0
        %v546 = vadd.f32 0.0, %v545
        %v547 = vpop.f32.mrf.mxu0
        %v548 = vadd.f32 0.0, %v547
        %v549 = vpop.f32.mrf.mxu0
        %v550 = vadd.f32 0.0, %v549
        %v551 = vpop.f32.mrf.mxu0
        %v552 = vadd.f32 0.0, %v551
        %553 = vmatprep.mubr.bf16.mxu0 0
        %554 = vmatmul.mubr.bf16.gmra.mxu0 %v360
        %v555 = vpop.f32.mrf.mxu0
        %v556 = vpop.f32.mrf.mxu0
        %v557 = vpop.f32.mrf.mxu0
        %v558 = vpop.f32.mrf.mxu0
        %559 = vdwg.mxu0
        %560 = vmatprep.subr.bf16.mxu0 0
        %561 = vmatpush1.bf16.msra.mxu0 %v468
        %562 = vmatprep.subr.bf16.mxu0 0
        %563 = vmatpush1.bf16.msra.mxu0 %v465
        %564 = vmatprep.subr.bf16.mxu0 0
        %565 = vmatpush1.bf16.msra.mxu0 %v462
        %566 = vmatprep.subr.bf16.mxu0 0
        %567 = vmatpush1.bf16.msra.mxu0 %v459
        %568 = vmatprep.subr.bf16.mxu0 0
        %569 = vmatpush1.bf16.msra.mxu0 %v456
        %570 = vmatprep.subr.bf16.mxu0 0
        %571 = vmatpush1.bf16.msra.mxu0 %v453
        %572 = vmatprep.subr.bf16.mxu0 0
        %573 = vmatpush1.bf16.msra.mxu0 %v450
        %574 = vmatprep.subr.bf16.mxu0 0
        %575 = vmatpush1.bf16.msra.mxu0 %v447
        %576 = vmatprep.subr.bf16.mxu0 0
        %577 = vmatpush2.bf16.msra.mxu0 0
        %578 = vmatprep.subr.bf16.mxu0 0
        %579 = vmatpush2.bf16.msra.mxu0 0
        %580 = vmatprep.subr.bf16.mxu0 0
        %581 = vmatpush2.bf16.msra.mxu0 0
        %582 = vmatprep.subr.bf16.mxu0 0
        %583 = vmatpush2.bf16.msra.mxu0 0
        %584 = vmatprep.subr.bf16.mxu0 0
        %585 = vmatpush2.bf16.msra.mxu0 0
        %586 = vmatprep.subr.bf16.mxu0 0
        %587 = vmatpush2.bf16.msra.mxu0 0
        %588 = vmatprep.subr.bf16.mxu0 0
        %589 = vmatpush2.bf16.msra.mxu0 0
        %590 = vmatprep.subr.bf16.mxu0 0
        %591 = vmatpush2.bf16.msra.mxu0 0
        %592 = vmatprep.mubr.bf16.mxu0 0
        %593 = vmatmul.mubr.bf16.gmra.mxu0 %v357
        %v594 = vpop.f32.mrf.mxu0
        %v595 = vpop.f32.mrf.mxu0
        %v596 = vpop.f32.mrf.mxu0
        %v597 = vadd.f32 0.0, %v596
        %v598 = vpop.f32.mrf.mxu0
        %599 = vmatprep.mubr.bf16.mxu0 0
        %600 = vmatmul.mubr.bf16.gmra.mxu0 %v358
        %v601 = vpop.f32.mrf.mxu0
        %v602 = vadd.f32 0.0, %v601
        %v603 = vpop.f32.mrf.mxu0
        %v604 = vpop.f32.mrf.mxu0
        %v605 = vadd.f32 0.0, %v604
        %v606 = vpop.f32.mrf.mxu0
        %607 = vmatprep.mubr.bf16.mxu0 0
        %608 = vmatmul.mubr.bf16.gmra.mxu0 %v359
        %v609 = vpop.f32.mrf.mxu0
        %v610 = vadd.f32 0.0, %v609
        %v611 = vpop.f32.mrf.mxu0
        %v612 = vpop.f32.mrf.mxu0
        %v613 = vadd.f32 0.0, %v612
        %v614 = vpop.f32.mrf.mxu0
        %615 = vmatprep.mubr.bf16.mxu0 0
        %616 = vmatmul.mubr.bf16.gmra.mxu0 %v360
        %v617 = vpop.f32.mrf.mxu0
        %v618 = vadd.f32 0.0, %v617
        %v619 = vpop.f32.mrf.mxu0
        %v620 = vpop.f32.mrf.mxu0
        %v621 = vpop.f32.mrf.mxu0
        %622 = vdwg.mxu0
        %vm625 = vcmask 1046528
        %v626 = vrot.slane %v533, 1
        %v627 = vrot.slane %v539, 1
        %v628 = vsel %vm625, %v626, %v627
        %v632 = vadd.f32 %v528, %v626
        %v633 = vadd.f32 %v531, %v628
        %v634 = vadd.f32 %v537, %v627
        %vm638 = vcmask 1045504
        %v639 = vrot.slane %v597, 2
        %v640 = vrot.slane %v602, 2
        %v641 = vsel %vm638, %v639, %v640
        %v642 = vrot.slane %v605, 2
        %v643 = vsel %vm638, %v640, %v642
        %v647 = vadd.f32 %v632, %v639
        %v648 = vadd.f32 %v633, %v641
        %v649 = vadd.f32 %v634, %v643
        %v650 = vld [vmem:[%s2] sm:$0x1]
        %v652 = vlaneseq
        %v653 = vshrl.u32 %v652, 7
        %v654 = vsub.s32 0, %v653
        %v655 = vrot.slane %v650, %v654
        %v657 = vadd.f32 %v647, %v655
        %v658 = vadd.f32 %v648, %v655
        %v659 = vadd.f32 %v649, %v655
        %v660 = vmax.f32 %v657, 0.0
        %v661 = vmax.f32 %v658, 0.0
        %v662 = vmax.f32 %v659, 0.0
        %v663 = vpack.c.bf16 %v661, %v660
        %v664 = vpack.c.bf16 %v662, %v662
        %v667 = vunpack.c.l.b16 %v663
        %v668 = vunpack.c.h.b16 %v663
        %v669 = vunpack.c.l.b16 %v664
        %v670 = vpack.c.b16 %v667, %v667
        %v671 = vpack.c.b16 %v668, %v668
        %v672 = vpack.c.b16 %v669, %v669
        %vm673 = vsmask.f32 256
        %vm674 = vsmask.f32 4368
        %vm675 = vmor %vm673, %vm674
        %v677 = vshrl.u32 %v670, 16
        %v679 = vrot.slane %v677, 7
        %v680 = vrot.slane %v679, 4
        %v682 = vshrl.u32 %v671, 16
        %v684 = vrot.slane %v682, 7
        %v685 = vshll.u32 %v671, 16
        %v687 = vor.u32 %v684, %v685
        %v688 = vsel %vm675, %v680, %v687
        %v689 = vrot.slane %v684, 4
        %v691 = vshrl.u32 %v672, 16
        %v693 = vrot.slane %v691, 7
        %v694 = vshll.u32 %v672, 16
        %v696 = vor.u32 %v693, %v694
        %v697 = vsel %vm675, %v689, %v696
        %700 = vst [vmem:[#allocation2 + $0x4] sm:$0xf] %v688
        %701 = vst [vmem:[#allocation2 + $0x8] sm:$0xf] %v697
        %v704 = vrot.slane %v548, 1
        %v705 = vrot.slane %v552, 1
        %v706 = vsel %vm625, %v704, %v705
        %v710 = vadd.f32 %v541, %v704
        %v711 = vadd.f32 %v546, %v706
        %v712 = vadd.f32 %v550, %v705
        %v716 = vrot.slane %v610, 2
        %v717 = vrot.slane %v613, 2
        %v718 = vsel %vm638, %v716, %v717
        %v719 = vrot.slane %v618, 2
        %v720 = vsel %vm638, %v717, %v719
        %v724 = vadd.f32 %v710, %v716
        %v725 = vadd.f32 %v711, %v718
        %v726 = vadd.f32 %v712, %v720
        %v727 = vld [vmem:[%s2] sm:$0x1]
        %v729 = vlaneseq
        %v730 = vshrl.u32 %v729, 7
        %v731 = vsub.s32 0, %v730
        %v732 = vrot.slane %v727, %v731
        %v734 = vadd.f32 %v724, %v732
        %v735 = vadd.f32 %v725, %v732
        %v736 = vadd.f32 %v726, %v732
        %v737 = vmax.f32 %v734, 0.0
        %v738 = vmax.f32 %v735, 0.0
        %v739 = vmax.f32 %v736, 0.0
        %v740 = vpack.c.bf16 %v738, %v737
        %v741 = vpack.c.bf16 %v739, %v739
        %v744 = vunpack.c.l.b16 %v740
        %v745 = vunpack.c.h.b16 %v740
        %v746 = vunpack.c.l.b16 %v741
        %v747 = vpack.c.b16 %v744, %v744
        %v748 = vpack.c.b16 %v745, %v745
        %v749 = vpack.c.b16 %v746, %v746
        %v751 = vshrl.u32 %v747, 16
        %v753 = vrot.slane %v751, 7
        %v754 = vrot.slane %v753, 4
        %v756 = vshrl.u32 %v748, 16
        %v758 = vrot.slane %v756, 7
        %v759 = vshll.u32 %v748, 16
        %v761 = vor.u32 %v758, %v759
        %v762 = vsel %vm675, %v754, %v761
        %v763 = vrot.slane %v758, 4
        %v765 = vshrl.u32 %v749, 16
        %v767 = vrot.slane %v765, 7
        %v768 = vshll.u32 %v749, 16
        %v770 = vor.u32 %v767, %v768
        %v771 = vsel %vm675, %v763, %v770
        %774 = vst [vmem:[#allocation2 + $0x10] sm:$0xf] %v762
        %775 = vst [vmem:[#allocation2 + $0x14] sm:$0xf] %v771
        %v776 = vld [vmem:[#allocation2] sm:$0xf]
        %v777 = vld [vmem:[#allocation2 + $0x4] sm:$0xf]
        %v778 = vld [vmem:[#allocation2 + $0x8] sm:$0xf]
        %v779 = vld [vmem:[#allocation2 + $0xc] sm:$0xf]
        %v780 = vld [vmem:[#allocation2 + $0x10] sm:$0xf]
        %v781 = vld [vmem:[#allocation2 + $0x14] sm:$0xf]
        %v782 = vld [vmem:[#allocation2 + $0x18] sm:$0xf]
        %v783 = vld [vmem:[#allocation8] sm:$0xff]
        %v784 = vld [vmem:[#allocation8 + $0x8] sm:$0xf]
        %v785 = vld [vmem:[#allocation8 + $0xc] sm:$0xff]
        %v786 = vld [vmem:[#allocation8 + $0x14] sm:$0xf]
        %v787 = vld [vmem:[#allocation8 + $0x18] sm:$0xff]
        %v788 = vld [vmem:[#allocation8 + $0x20] sm:$0xf]
        %v789 = vld [vmem:[#allocation8 + $0x24] sm:$0xff]
        %v790 = vld [vmem:[#allocation8 + $0x2c] sm:$0xf]
        %v791 = vld [vmem:[#allocation8 + $0x30] sm:$0xff]
        %v792 = vld [vmem:[#allocation8 + $0x38] sm:$0xf]
        %v793 = vld [vmem:[#allocation8 + $0x3c] sm:$0xff]
        %v794 = vld [vmem:[#allocation8 + $0x44] sm:$0xf]
        %v795 = vld [vmem:[#allocation8 + $0x48] sm:$0xff]
        %v796 = vld [vmem:[#allocation8 + $0x50] sm:$0xf]
        %v797 = vld [vmem:[#allocation8 + $0x54] sm:$0xff]
        %v798 = vld [vmem:[#allocation8 + $0x5c] sm:$0xf]
        %v799 = vld [vmem:[#allocation8 + $0x60] sm:$0xff]
        %v800 = vld [vmem:[#allocation8 + $0x68] sm:$0xf]
        %v801 = vld [vmem:[#allocation8 + $0x6c] sm:$0xff]
        %v802 = vld [vmem:[#allocation8 + $0x74] sm:$0xf]
        %v803 = vld [vmem:[#allocation8 + $0x78] sm:$0xff]
        %v804 = vld [vmem:[#allocation8 + $0x80] sm:$0xf]
        %v805 = vld [vmem:[#allocation8 + $0x84] sm:$0xff]
        %v806 = vld [vmem:[#allocation8 + $0x8c] sm:$0xf]
        %v807 = vld [vmem:[#allocation8 + $0x90] sm:$0xff]
        %v808 = vld [vmem:[#allocation8 + $0x98] sm:$0xf]
        %v809 = vld [vmem:[#allocation8 + $0x9c] sm:$0xff]
        %v810 = vld [vmem:[#allocation8 + $0xa4] sm:$0xf]
        %v811 = vld [vmem:[#allocation8 + $0xa8] sm:$0xff]
        %v812 = vld [vmem:[#allocation8 + $0xb0] sm:$0xf]
        %v813 = vld [vmem:[#allocation8 + $0xb4] sm:$0xff]
        %v814 = vld [vmem:[#allocation8 + $0xbc] sm:$0xf]
        %v822 = vunpack.c.l.b16 %v776
        %v823 = vunpack.c.l.b16 %v777
        %v824 = vunpack.c.l.b16 %v778
        %v825 = vunpack.c.l.b16 %v779
        %v826 = vunpack.c.l.b16 %v780
        %v827 = vunpack.c.l.b16 %v781
        %v828 = vunpack.c.l.b16 %v782
        %v829 = vpack.c.b16 %v823, %v822
        %v830 = vpack.c.b16 %v825, %v824
        %v831 = vpack.c.b16 %v827, %v826
        %v832 = vpack.c.b16 %v828, %v828
        %v869 = vunpack.c.l.b16 %v783
        %v870 = vunpack.c.h.b16 %v783
        %v871 = vunpack.c.l.b16 %v784
        %v872 = vunpack.c.l.b16 %v785
        %v873 = vunpack.c.h.b16 %v785
        %v874 = vunpack.c.l.b16 %v786
        %v875 = vunpack.c.l.b16 %v787
        %v876 = vunpack.c.h.b16 %v787
        %v877 = vunpack.c.l.b16 %v788
        %v878 = vunpack.c.l.b16 %v789
        %v879 = vunpack.c.h.b16 %v789
        %v880 = vunpack.c.l.b16 %v790
        %v881 = vunpack.c.l.b16 %v791
        %v882 = vunpack.c.h.b16 %v791
        %v883 = vunpack.c.l.b16 %v792
        %v884 = vunpack.c.l.b16 %v793
        %v885 = vunpack.c.h.b16 %v793
        %v886 = vunpack.c.l.b16 %v794
        %v887 = vunpack.c.l.b16 %v795
        %v888 = vunpack.c.h.b16 %v795
        %v889 = vunpack.c.l.b16 %v796
        %v890 = vunpack.c.l.b16 %v797
        %v891 = vunpack.c.h.b16 %v797
        %v892 = vunpack.c.l.b16 %v798
        %v893 = vunpack.c.l.b16 %v799
        %v894 = vunpack.c.h.b16 %v799
        %v895 = vunpack.c.l.b16 %v800
        %v896 = vunpack.c.l.b16 %v801
        %v897 = vunpack.c.h.b16 %v801
        %v898 = vunpack.c.l.b16 %v802
        %v899 = vunpack.c.l.b16 %v803
        %v900 = vunpack.c.h.b16 %v803
        %v901 = vunpack.c.l.b16 %v804
        %v902 = vunpack.c.l.b16 %v805
        %v903 = vunpack.c.h.b16 %v805
        %v904 = vunpack.c.l.b16 %v806
        %v905 = vunpack.c.l.b16 %v807
        %v906 = vunpack.c.h.b16 %v807
        %v907 = vunpack.c.l.b16 %v808
        %v908 = vunpack.c.l.b16 %v809
        %v909 = vunpack.c.h.b16 %v809
        %v910 = vunpack.c.l.b16 %v810
        %v911 = vunpack.c.l.b16 %v811
        %v912 = vunpack.c.h.b16 %v811
        %v913 = vunpack.c.l.b16 %v812
        %v914 = vunpack.c.l.b16 %v813
        %v915 = vunpack.c.h.b16 %v813
        %v916 = vunpack.c.l.b16 %v814
        %v917 = vpack.c.b16 %v872, %v869
        %v918 = vpack.c.b16 %v873, %v870
        %v919 = vpack.c.b16 %v874, %v871
        %v920 = vpack.c.b16 %v878, %v875
        %v921 = vpack.c.b16 %v879, %v876
        %v922 = vpack.c.b16 %v880, %v877
        %v923 = vpack.c.b16 %v884, %v881
        %v924 = vpack.c.b16 %v885, %v882
        %v925 = vpack.c.b16 %v886, %v883
        %v926 = vpack.c.b16 %v890, %v887
        %v927 = vpack.c.b16 %v891, %v888
        %v928 = vpack.c.b16 %v892, %v889
        %v929 = vpack.c.b16 %v896, %v893
        %v930 = vpack.c.b16 %v897, %v894
        %v931 = vpack.c.b16 %v898, %v895
        %v932 = vpack.c.b16 %v902, %v899
        %v933 = vpack.c.b16 %v903, %v900
        %v934 = vpack.c.b16 %v904, %v901
        %v935 = vpack.c.b16 %v908, %v905
        %v936 = vpack.c.b16 %v909, %v906
        %v937 = vpack.c.b16 %v910, %v907
        %v938 = vpack.c.b16 %v914, %v911
        %v939 = vpack.c.b16 %v915, %v912
        %v940 = vpack.c.b16 %v916, %v913
        %965 = vmatprep.subr.bf16.mxu0 %v939
        %966 = vmatpush1.bf16.msra.mxu0 %v938
        %967 = vmatprep.subr.bf16.mxu0 %v936
        %968 = vmatpush1.bf16.msra.mxu0 %v935
        %969 = vmatprep.subr.bf16.mxu0 %v933
        %970 = vmatpush1.bf16.msra.mxu0 %v932
        %971 = vmatprep.subr.bf16.mxu0 %v930
        %972 = vmatpush1.bf16.msra.mxu0 %v929
        %973 = vmatprep.subr.bf16.mxu0 %v927
        %974 = vmatpush1.bf16.msra.mxu0 %v926
        %975 = vmatprep.subr.bf16.mxu0 %v924
        %976 = vmatpush1.bf16.msra.mxu0 %v923
        %977 = vmatprep.subr.bf16.mxu0 %v921
        %978 = vmatpush1.bf16.msra.mxu0 %v920
        %979 = vmatprep.subr.bf16.mxu0 %v918
        %980 = vmatpush1.bf16.msra.mxu0 %v917
        %981 = vmatprep.subr.bf16.mxu0 0
        %982 = vmatpush2.bf16.msra.mxu0 0
        %983 = vmatprep.subr.bf16.mxu0 0
        %984 = vmatpush2.bf16.msra.mxu0 0
        %985 = vmatprep.subr.bf16.mxu0 0
        %986 = vmatpush2.bf16.msra.mxu0 0
        %987 = vmatprep.subr.bf16.mxu0 0
        %988 = vmatpush2.bf16.msra.mxu0 0
        %989 = vmatprep.subr.bf16.mxu0 0
        %990 = vmatpush2.bf16.msra.mxu0 0
        %991 = vmatprep.subr.bf16.mxu0 0
        %992 = vmatpush2.bf16.msra.mxu0 0
        %993 = vmatprep.subr.bf16.mxu0 0
        %994 = vmatpush2.bf16.msra.mxu0 0
        %995 = vmatprep.subr.bf16.mxu0 0
        %996 = vmatpush2.bf16.msra.mxu0 0
        %997 = vmatprep.mubr.bf16.mxu0 0
        %998 = vmatmul.mubr.bf16.gmra.mxu0 %v829
        %v999 = vpop.f32.mrf.mxu0
        %v1000 = vadd.f32 0.0, %v999
        %v1001 = vpop.f32.mrf.mxu0
        %v1002 = vpop.f32.mrf.mxu0
        %v1003 = vadd.f32 0.0, %v1002
        %v1004 = vpop.f32.mrf.mxu0
        %v1005 = vadd.f32 0.0, %v1004
        %1006 = vmatprep.mubr.bf16.mxu0 0
        %1007 = vmatmul.mubr.bf16.gmra.mxu0 %v830
        %v1008 = vpop.f32.mrf.mxu0
        %v1009 = vadd.f32 0.0, %v1008
        %v1010 = vpop.f32.mrf.mxu0
        %v1011 = vadd.f32 0.0, %v1010
        %v1012 = vpop.f32.mrf.mxu0
        %v1013 = vadd.f32 0.0, %v1012
        %v1014 = vpop.f32.mrf.mxu0
        %1015 = vmatprep.mubr.bf16.mxu0 0
        %1016 = vmatmul.mubr.bf16.gmra.mxu0 %v831
        %v1017 = vpop.f32.mrf.mxu0
        %v1018 = vadd.f32 0.0, %v1017
        %v1019 = vpop.f32.mrf.mxu0
        %v1020 = vadd.f32 0.0, %v1019
        %v1021 = vpop.f32.mrf.mxu0
        %v1022 = vadd.f32 0.0, %v1021
        %v1023 = vpop.f32.mrf.mxu0
        %v1024 = vadd.f32 0.0, %v1023
        %1025 = vmatprep.mubr.bf16.mxu0 0
        %1026 = vmatmul.mubr.bf16.gmra.mxu0 %v832
        %v1027 = vpop.f32.mrf.mxu0
        %v1028 = vpop.f32.mrf.mxu0
        %v1029 = vpop.f32.mrf.mxu0
        %v1030 = vpop.f32.mrf.mxu0
        %1031 = vdwg.mxu0
        %1032 = vmatprep.subr.bf16.mxu0 0
        %1033 = vmatpush1.bf16.msra.mxu0 %v940
        %1034 = vmatprep.subr.bf16.mxu0 0
        %1035 = vmatpush1.bf16.msra.mxu0 %v937
        %1036 = vmatprep.subr.bf16.mxu0 0
        %1037 = vmatpush1.bf16.msra.mxu0 %v934
        %1038 = vmatprep.subr.bf16.mxu0 0
        %1039 = vmatpush1.bf16.msra.mxu0 %v931
        %1040 = vmatprep.subr.bf16.mxu0 0
        %1041 = vmatpush1.bf16.msra.mxu0 %v928
        %1042 = vmatprep.subr.bf16.mxu0 0
        %1043 = vmatpush1.bf16.msra.mxu0 %v925
        %1044 = vmatprep.subr.bf16.mxu0 0
        %1045 = vmatpush1.bf16.msra.mxu0 %v922
        %1046 = vmatprep.subr.bf16.mxu0 0
        %1047 = vmatpush1.bf16.msra.mxu0 %v919
        %1048 = vmatprep.subr.bf16.mxu0 0
        %1049 = vmatpush2.bf16.msra.mxu0 0
        %1050 = vmatprep.subr.bf16.mxu0 0
        %1051 = vmatpush2.bf16.msra.mxu0 0
        %1052 = vmatprep.subr.bf16.mxu0 0
        %1053 = vmatpush2.bf16.msra.mxu0 0
        %1054 = vmatprep.subr.bf16.mxu0 0
        %1055 = vmatpush2.bf16.msra.mxu0 0
        %1056 = vmatprep.subr.bf16.mxu0 0
        %1057 = vmatpush2.bf16.msra.mxu0 0
        %1058 = vmatprep.subr.bf16.mxu0 0
        %1059 = vmatpush2.bf16.msra.mxu0 0
        %1060 = vmatprep.subr.bf16.mxu0 0
        %1061 = vmatpush2.bf16.msra.mxu0 0
        %1062 = vmatprep.subr.bf16.mxu0 0
        %1063 = vmatpush2.bf16.msra.mxu0 0
        %1064 = vmatprep.mubr.bf16.mxu0 0
        %1065 = vmatmul.mubr.bf16.gmra.mxu0 %v829
        %v1066 = vpop.f32.mrf.mxu0
        %v1067 = vpop.f32.mrf.mxu0
        %v1068 = vpop.f32.mrf.mxu0
        %v1069 = vadd.f32 0.0, %v1068
        %v1070 = vpop.f32.mrf.mxu0
        %1071 = vmatprep.mubr.bf16.mxu0 0
        %1072 = vmatmul.mubr.bf16.gmra.mxu0 %v830
        %v1073 = vpop.f32.mrf.mxu0
        %v1074 = vadd.f32 0.0, %v1073
        %v1075 = vpop.f32.mrf.mxu0
        %v1076 = vpop.f32.mrf.mxu0
        %v1077 = vadd.f32 0.0, %v1076
        %v1078 = vpop.f32.mrf.mxu0
        %1079 = vmatprep.mubr.bf16.mxu0 0
        %1080 = vmatmul.mubr.bf16.gmra.mxu0 %v831
        %v1081 = vpop.f32.mrf.mxu0
        %v1082 = vadd.f32 0.0, %v1081
        %v1083 = vpop.f32.mrf.mxu0
        %v1084 = vpop.f32.mrf.mxu0
        %v1085 = vadd.f32 0.0, %v1084
        %v1086 = vpop.f32.mrf.mxu0
        %1087 = vmatprep.mubr.bf16.mxu0 0
        %1088 = vmatmul.mubr.bf16.gmra.mxu0 %v832
        %v1089 = vpop.f32.mrf.mxu0
        %v1090 = vadd.f32 0.0, %v1089
        %v1091 = vpop.f32.mrf.mxu0
        %v1092 = vpop.f32.mrf.mxu0
        %v1093 = vpop.f32.mrf.mxu0
        %1094 = vdwg.mxu0
        %v1097 = vrot.slane %v1005, 1
        %v1098 = vrot.slane %v1011, 1
        %v1099 = vsel %vm625, %v1097, %v1098
        %v1103 = vadd.f32 %v1000, %v1097
        %v1104 = vadd.f32 %v1003, %v1099
        %v1105 = vadd.f32 %v1009, %v1098
        %v1109 = vrot.slane %v1069, 2
        %v1110 = vrot.slane %v1074, 2
        %v1111 = vsel %vm638, %v1109, %v1110
        %v1112 = vrot.slane %v1077, 2
        %v1113 = vsel %vm638, %v1110, %v1112
        %v1117 = vadd.f32 %v1103, %v1109
        %v1118 = vadd.f32 %v1104, %v1111
        %v1119 = vadd.f32 %v1105, %v1113
        %v1120 = vld [vmem:[%s4] sm:$0x1]
        %v1122 = vlaneseq
        %v1123 = vshrl.u32 %v1122, 7
        %v1124 = vsub.s32 0, %v1123
        %v1125 = vrot.slane %v1120, %v1124
        %v1127 = vadd.f32 %v1117, %v1125
        %v1128 = vadd.f32 %v1118, %v1125
        %v1129 = vadd.f32 %v1119, %v1125
        %v1130 = vld [vmem:[%s238] sm:$0xff]
        %v1131 = vld [vmem:[%s238 + $0x8] sm:$0xff]
        %v1134 = vrot.slane %v1130, 1
        %v1135 = vrot.slane %v1131, 1
        %v1136 = vsel %vm625, %v1134, %v1135
        %v1140 = vadd.f32 %v1127, %v1134
        %v1141 = vadd.f32 %v1128, %v1136
        %v1142 = vadd.f32 %v1129, %v1135
        %v1143 = vmax.f32 %v1140, 0.0
        %v1144 = vmax.f32 %v1141, 0.0
        %v1145 = vmax.f32 %v1142, 0.0
        %1146 = vst [vmem:[%s272 - $0x7] sm:$0x80] %v1143
        %1147 = vst [vmem:[%s272 + $0x1] sm:$0xff] %v1144
        %1148 = vst [vmem:[%s272 + $0x9] sm:$0x7f] %v1145
        %v1151 = vrot.slane %v1020, 1
        %v1152 = vrot.slane %v1024, 1
        %v1153 = vsel %vm625, %v1151, %v1152
        %v1157 = vadd.f32 %v1013, %v1151
        %v1158 = vadd.f32 %v1018, %v1153
        %v1159 = vadd.f32 %v1022, %v1152
        %v1163 = vrot.slane %v1082, 2
        %v1164 = vrot.slane %v1085, 2
        %v1165 = vsel %vm638, %v1163, %v1164
        %v1166 = vrot.slane %v1090, 2
        %v1167 = vsel %vm638, %v1164, %v1166
        %v1171 = vadd.f32 %v1157, %v1163
        %v1172 = vadd.f32 %v1158, %v1165
        %v1173 = vadd.f32 %v1159, %v1167
        %v1174 = vld [vmem:[%s4] sm:$0x1]
        %v1176 = vlaneseq
        %v1177 = vshrl.u32 %v1176, 7
        %v1178 = vsub.s32 0, %v1177
        %v1179 = vrot.slane %v1174, %v1178
        %v1181 = vadd.f32 %v1171, %v1179
        %v1182 = vadd.f32 %v1172, %v1179
        %v1183 = vadd.f32 %v1173, %v1179
        %v1184 = vld [vmem:[%s291] sm:$0xff]
        %v1185 = vld [vmem:[%s291 + $0x8] sm:$0xff]
        %v1188 = vrot.slane %v1184, 1
        %v1189 = vrot.slane %v1185, 1
        %v1190 = vsel %vm625, %v1188, %v1189
        %v1194 = vadd.f32 %v1181, %v1188
        %v1195 = vadd.f32 %v1182, %v1190
        %v1196 = vadd.f32 %v1183, %v1189
        %v1197 = vmax.f32 %v1194, 0.0
        %v1198 = vmax.f32 %v1195, 0.0
        %v1199 = vmax.f32 %v1196, 0.0
        %s1200 = scalar_lea.vmem %s272, 16 [#allocation9]
        %1201 = vst [vmem:[%s1200 - $0x7] sm:$0x80] %v1197
        %1202 = vst [vmem:[%s1200 + $0x1] sm:$0xff] %v1198
        %1203 = vst [vmem:[%s1200 + $0x9] sm:$0x7f] %v1199
        %s1204 = sand.u32 %s141, 1
        %s1205 = scalar_lea.sflag [#allocation5], %s1204
        %s1206 = sand.u32 %s141, 1
        %s1207 = smul.addr %s1206, 32
        %s1208 = scalar_lea.vmem [#allocation9], %s1207
        // Predicated region
        $region53: #{tpu_custom_call.1} parent=39 // pred_check
          %p1209 = pneg %p151
        $region54: #{tpu_custom_call.1} parent=39 // pred_check_branch
          %1211 = sbr.rel (%p1209) target = $region56
        $region55: #{tpu_custom_call.1} parent=39 // pred_region
          %s1212 = smul.u32 2, %s23
          %s1214 = ssub.s32 512, 512
          %1215 = vsyncadd %s1205, %s1214
          %s1216 = smul.addr %s1212, 2
          %s1217 = smul.addr %s1216, 128
          %s1218 = scalar_lea.hbm %s5, %s1217
          %s1219 = sshll.u32 %s1208, 4
          %s1220 = int_to_ptr.vmem [resolvable:$true] %s1219
          %1225 = dma.vmem_to_hbm [thread:$0]  %s1220, 512, %s1218, %s1205, 128, 128, 8
        $region56: #{tpu_custom_call.1} parent=39 // pred_fallthru
          _
      $region40: #{tpu_custom_call.1} parent=5 // pred_fallthru
        _
      %p1226 = scmp.le.s32.totalorder 2, %s18
      // Predicated region
      $region57: #{tpu_custom_call.1} parent=5 // pred_check
        %p1227 = pneg %p1226
      $region58: #{tpu_custom_call.1} parent=5 // pred_check_branch
        %1229 = sbr.rel (%p1227) target = $region60
      $region59: #{tpu_custom_call.1} parent=5 // pred_region
        %s1230 = ssub.s32 %s18, 2
        // Predicated region
        $region61: #{tpu_custom_call.1} parent=59 // pred_check
          %p1231 = pneg %p157
        $region62: #{tpu_custom_call.1} parent=59 // pred_check_branch
          %1233 = sbr.rel (%p1231) target = $region64
        $region63: #{tpu_custom_call.1} parent=59 // pred_region
          %s1234 = sand.u32 %s142, 1
          %s1235 = scalar_lea.sflag [#allocation5], %s1234
          %s1236 = sand.u32 %s142, 1
          %s1237 = smul.addr %s1236, 32
          %s1238 = scalar_lea.vmem [#allocation9], %s1237
          %1239 = dma.done %s1235, 512
        $region64: #{tpu_custom_call.1} parent=59 // pred_fallthru
          _
      $region60: #{tpu_custom_call.1} parent=5 // pred_fallthru
        _
    $region6: #{tpu_custom_call.1} parent=1 // loop_footer
      %s22 = sadd.s32 1, %s18
    $region7: #{tpu_custom_call.1} parent=1 // loop_footer_branch
      %17 = sbr.rel target = $region3
    $region8: #{tpu_custom_call.1} parent=1 // loop_exit
      _
    %1240 = vsyncpa [#allocation4], 1
    %s1241 = scalar_lea.sflag [#allocation4], 1
    %1242 = vsyncpa %s1241, 1
    %1243 = vsyncpa [#allocation7], 1
    %1244 = vsyncpa [#allocation5], 1
    %s1245 = scalar_lea.sflag [#allocation5], 1
    %1246 = vsyncpa %s1245, 1

</llo_original>
